<compile_context>
chip_gen: v5e
topology: v5e:2x2
jax: 0.10.0
libtpu: 0.0.40
codegen_flags: <defaults>
</compile_context>

<pallas_src>
import functools
import math

import jax
import jax.numpy as jnp
from jax.experimental import pallas as pl
from jax.experimental.pallas import tpu as pltpu


_VMEM_LIMIT_BYTES = 32 * 1024 * 1024       # >= default scoped limit on all gens
_VMEM_TILE_BUDGET = 12 * 1024 * 1024       # per-step activation budget (headroom on v7x)


# ------------------------- one-time parameter prep -------------------------
def prepare_mlp_params(w1, b1, w2, b2):
    """Call once; reuse the result for every forward call."""
    H = w1.shape[1]
    return (jnp.asarray(w1),                       # (Dx+Dy, H)
            jnp.asarray(b1).reshape(1, H),
            jnp.asarray(w2),                       # (H, H)
            jnp.asarray(b2).reshape(1, H))


def prepare_attn_params(wq, wk, wv, wo, bq, bk, bv, bo):
    """Call once; folds the 1/sqrt(E) softmax scale into Wq/bq."""
    E = wq.shape[1]
    scale = 1.0 / math.sqrt(E)
    return (jnp.asarray(wq) * scale, jnp.asarray(bq).reshape(1, E) * scale,
            jnp.asarray(wk),         jnp.asarray(bk).reshape(1, E),
            jnp.asarray(wv),         jnp.asarray(bv).reshape(1, E),
            jnp.asarray(wo),         jnp.asarray(bo).reshape(1, E))


# ----------------------------- MLP branch ----------------------------------
def _mlp_kernel(x_ref, y_ref, w1_ref, b1_ref, w2_ref, b2_ref, o_ref):
    # x: (tm, Dx)  y: (tm, Dy)  w1: (Dx+Dy, H)  b1: (1, H)  w2: (H, H)  o: (tm, H)
    # In-VMEM concat (a few lane shifts) -> single K=(Dx+Dy) MXU push for layer 1.
    ctx = jnp.concatenate([x_ref[...], y_ref[...]], axis=-1)
    h = jnp.dot(ctx, w1_ref[...], preferred_element_type=jnp.float32) + b1_ref[...]
    h = jnp.maximum(h, 0.0)                                        # ReLU (VPU, f32)
    out = jnp.dot(h, w2_ref[...], preferred_element_type=jnp.float32) + b2_ref[...]
    o_ref[...] = out.astype(o_ref.dtype)


def encoder_mlp(context_X, context_y, mlp_params, *, tile_m=1024):
    """apply_attention=False branch: mlp(cat(context_X, context_y, -1))."""
    B, N, Dx = context_X.shape
    Dy = context_y.shape[-1]
    w1, b1, w2, b2 = mlp_params
    H = w1.shape[1]
    M = B * N

    x_flat = context_X.reshape(M, Dx)
    y_flat = context_y.reshape(M, Dy)

    # Row tile: as large as the VMEM budget allows (2x-buffered in/out + hidden).
    bytes_per_row = 4 * (2 * (Dx + Dy + H) + Dx + Dy + H)
    budget_rows = max(8, _VMEM_TILE_BUDGET // max(bytes_per_row, 1))
    tm = min(tile_m, budget_rows, M)
    if tm < M:
        tm = max(8, (tm // 8) * 8)
    grid = (pl.cdiv(M, tm),)

    out = pl.pallas_call(
        _mlp_kernel,
        out_shape=jax.ShapeDtypeStruct((M, H), context_X.dtype),
        grid=grid,
        in_specs=[
            pl.BlockSpec((tm, Dx), lambda i: (i, 0)),          # x rows (pipelined)
            pl.BlockSpec((tm, Dy), lambda i: (i, 0)),          # y rows (pipelined)
            pl.BlockSpec((Dx + Dy, H), lambda i: (0, 0)),      # W1 (resident)
            pl.BlockSpec((1, H), lambda i: (0, 0)),            # b1
            pl.BlockSpec((H, H), lambda i: (0, 0)),            # W2 (resident)
            pl.BlockSpec((1, H), lambda i: (0, 0)),            # b2
        ],
        out_specs=pl.BlockSpec((tm, H), lambda i: (i, 0)),     # true H: no pad/slice
        compiler_params=pltpu.CompilerParams(
            dimension_semantics=("parallel",),
            vmem_limit_bytes=_VMEM_LIMIT_BYTES),
    )(x_flat, y_flat, w1, b1, w2, b2)

    return out.reshape(B, N, H)


# --------------------------- Attention branch -------------------------------
def _attn_kernel(y_ref, x_ref, wq_ref, bq_ref, wk_ref, bk_ref, wv_ref, bv_ref,
                 wo_ref, bo_ref, o_ref, *, batch_tile, n_ctx, e_dim):
    # y: (bt, N, Dy)  x: (bt, N, Dx)  weights resident in VMEM.
    bt, n, e = batch_tile, n_ctx, e_dim

    # Merge (bt, N) -> rows for the projection matmuls (free when N % 8 == 0).
    y = y_ref[...].reshape(bt * n, y_ref.shape[-1])
    x = x_ref[...].reshape(bt * n, x_ref.shape[-1])

    # Projections (scale already folded into Wq/bq at prep time).
    q = jnp.dot(y, wq_ref[...], preferred_element_type=jnp.float32) + bq_ref[...]
    k = jnp.dot(y, wk_ref[...], preferred_element_type=jnp.float32) + bk_ref[...]
    v = jnp.dot(x, wv_ref[...], preferred_element_type=jnp.float32) + bv_ref[...]

    qb = q.reshape(bt, n, e)
    kb = k.reshape(bt, n, e)
    vb = v.reshape(bt, n, e)

    # Batched scores + softmax (tiny N x N block rides along per batch tile).
    s = jnp.einsum("bqe,bke->bqk", qb, kb, preferred_element_type=jnp.float32)
    s = s - jnp.max(s, axis=-1, keepdims=True)
    p = jnp.exp(s)
    p = p * pl.reciprocal(jnp.sum(p, axis=-1, keepdims=True), approx=True)

    attn = jnp.einsum("bqk,bke->bqe", p, vb, preferred_element_type=jnp.float32)

    out = jnp.dot(attn.reshape(bt * n, e), wo_ref[...],
                  preferred_element_type=jnp.float32) + bo_ref[...]
    o_ref[...] = out.reshape(bt, n, e).astype(o_ref.dtype)


def encoder_attention(context_X, context_y, attn_params, *, rows_per_tile=512):
    """apply_attention=True branch: MHA(query=y, key=y, value=x) -> attn_output."""
    # TODO(synk): nn.MultiheadAttention dropout not implemented (assumes dropout=0 / eval).
    B, N, Dx = context_X.shape
    Dy = context_y.shape[-1]
    wq, bq, wk, bk, wv, bv, wo, bo = attn_params
    E = wq.shape[1]                                            # embed_dim == Dy

    # Whole batches per grid step; ~rows_per_tile rows, capped by a VMEM budget
    # (fits v7x's 64 MiB physical / 32 MiB scoped default with headroom).
    bytes_per_batch = 4 * N * (2 * (Dx + Dy + E) + 3 * E + N)
    budget_batches = max(1, _VMEM_TILE_BUDGET // max(bytes_per_batch, 1))
    bt = max(1, min(B, max(1, rows_per_tile // max(N, 1)), budget_batches))
    grid = (pl.cdiv(B, bt),)

    kernel = functools.partial(_attn_kernel, batch_tile=bt, n_ctx=N, e_dim=E)
    out = pl.pallas_call(
        kernel,
        out_shape=jax.ShapeDtypeStruct((B, N, E), context_y.dtype),
        grid=grid,
        in_specs=[
            pl.BlockSpec((bt, N, Dy), lambda b: (b, 0, 0)),    # context_y (pipelined)
            pl.BlockSpec((bt, N, Dx), lambda b: (b, 0, 0)),    # context_X (pipelined)
            pl.BlockSpec((Dy, E), lambda b: (0, 0)),           # Wq (scale folded, resident)
            pl.BlockSpec((1, E), lambda b: (0, 0)),            # bq
            pl.BlockSpec((Dy, E), lambda b: (0, 0)),           # Wk
            pl.BlockSpec((1, E), lambda b: (0, 0)),            # bk
            pl.BlockSpec((Dx, E), lambda b: (0, 0)),           # Wv
            pl.BlockSpec((1, E), lambda b: (0, 0)),            # bv
            pl.BlockSpec((E, E), lambda b: (0, 0)),            # Wo (out_proj)
            pl.BlockSpec((1, E), lambda b: (0, 0)),            # bo
        ],
        out_specs=pl.BlockSpec((bt, N, E), lambda b: (b, 0, 0)),  # true E: no pad/slice
        compiler_params=pltpu.CompilerParams(
            dimension_semantics=("parallel",),
            vmem_limit_bytes=_VMEM_LIMIT_BYTES),
    )(context_y, context_X, wq, bq, wk, bk, wv, bv, wo, bo)

    return out


# ------------------------------- Encoder -----------------------------------
def encoder_forward(apply_attention, context_X, context_y, target_X,
                    mlp_params=None, attn_params=None):
    # target_X is accepted but unused by Encoder.forward (matches PyTorch).
    if apply_attention:
        if attn_params is None:
            raise ValueError("Invalid attention module.")
        return encoder_attention(context_X, context_y, attn_params)
    else:
        if mlp_params is None:
            raise ValueError("Invalid MLP module.")
        return encoder_mlp(context_X, context_y, mlp_params)


if __name__ == "__main__":
    B, N, Dx, Dy, H = 2, 8, 16, 16, 32
    E = Dy  # attention embed_dim

    key = jax.random.PRNGKey(0)
    keys = jax.random.split(key, 16)

    context_X = jax.random.normal(keys[0], (B, N, Dx), dtype=jnp.float32)
    context_y = jax.random.normal(keys[1], (B, N, Dy), dtype=jnp.float32)
    target_X = jax.random.normal(keys[2], (B, N, Dx), dtype=jnp.float32)

    # raw MLP params: Linear(Dx+Dy, H) -> ReLU -> Linear(H, H)
    w1 = 0.1 * jax.random.normal(keys[3], (Dx + Dy, H), dtype=jnp.float32)
    b1 = 0.1 * jax.random.normal(keys[4], (H,), dtype=jnp.float32)
    w2 = 0.1 * jax.random.normal(keys[5], (H, H), dtype=jnp.float32)
    b2 = 0.1 * jax.random.normal(keys[6], (H,), dtype=jnp.float32)

    # raw single-head MHA params (embed_dim=Dy, kdim=Dy, vdim=Dx)
    wq = 0.1 * jax.random.normal(keys[7], (Dy, E), dtype=jnp.float32)
    wk = 0.1 * jax.random.normal(keys[8], (Dy, E), dtype=jnp.float32)
    wv = 0.1 * jax.random.normal(keys[9], (Dx, E), dtype=jnp.float32)
    wo = 0.1 * jax.random.normal(keys[10], (E, E), dtype=jnp.float32)
    bq = 0.1 * jax.random.normal(keys[11], (E,), dtype=jnp.float32)
    bk = 0.1 * jax.random.normal(keys[12], (E,), dtype=jnp.float32)
    bv = 0.1 * jax.random.normal(keys[13], (E,), dtype=jnp.float32)
    bo = 0.1 * jax.random.normal(keys[14], (E,), dtype=jnp.float32)

    # One-time parameter preparation (hoisted out of the forward path).
    mlp_params = prepare_mlp_params(w1, b1, w2, b2)
    attn_params = prepare_attn_params(wq, wk, wv, wo, bq, bk, bv, bo)

    # MLP branch (apply_attention=False)
    out_mlp = encoder_forward(False, context_X, context_y, target_X,
                              mlp_params=mlp_params)
    jax.block_until_ready(out_mlp)
    assert out_mlp.shape == (B, N, H), out_mlp.shape

    # Attention branch (apply_attention=True)
    out_attn = encoder_forward(True, context_X, context_y, target_X,
                               attn_params=attn_params)
    jax.block_until_ready(out_attn)
    assert out_attn.shape == (B, N, E), out_attn.shape

    # quick correctness check against pure-JAX reference (uses raw params)
    ctx = jnp.concatenate([context_X, context_y], axis=-1)
    ref_mlp = jnp.maximum(ctx @ w1 + b1, 0.0) @ w2 + b2

    q = context_y @ wq + bq
    k = context_y @ wk + bk
    v = context_X @ wv + bv
    p = jax.nn.softmax(jnp.einsum("bnd,bmd->bnm", q, k) / math.sqrt(E), axis=-1)
    ref_attn = jnp.einsum("bnm,bmd->bnd", p, v) @ wo + bo

    assert jnp.allclose(out_mlp, ref_mlp, atol=1e-4), "MLP branch mismatch"
    # approx reciprocal (EUP vrcp) in the softmax -> slightly looser tolerance
    assert jnp.allclose(out_attn, ref_attn, atol=2e-3), "Attention branch mismatch"

    print("KERNEL_OK")
</pallas_src>

<mosaic_0001>
module attributes {stable_mosaic.version = 11 : i64} {
  func.func @_mlp_kernel(%arg0: i32, %arg1: memref<16x16xf32, #tpu.memory_space<vmem>>, %arg2: memref<16x16xf32, #tpu.memory_space<vmem>>, %arg3: memref<32x32xf32, #tpu.memory_space<vmem>>, %arg4: memref<1x32xf32, #tpu.memory_space<vmem>>, %arg5: memref<32x32xf32, #tpu.memory_space<vmem>>, %arg6: memref<1x32xf32, #tpu.memory_space<vmem>>, %arg7: memref<16x32xf32, #tpu.memory_space<vmem>>) attributes {dimension_semantics = [#tpu.dimension_semantics<parallel>], iteration_bounds = array<i64: 1>, scalar_prefetch = 0 : i64, scratch_operands = 0 : i64, tpu.core_type = #tpu.core_type<tc>, window_params = [{transform_indices = @transform_0, window_bounds = array<i64: 16, 16>}, {transform_indices = @transform_1, window_bounds = array<i64: 16, 16>}, {pipeline_mode = #tpu.pipeline_mode<synchronous>, transform_indices = @transform_2, window_bounds = array<i64: 32, 32>}, {pipeline_mode = #tpu.pipeline_mode<synchronous>, transform_indices = @transform_3, window_bounds = array<i64: 1, 32>}, {pipeline_mode = #tpu.pipeline_mode<synchronous>, transform_indices = @transform_4, window_bounds = array<i64: 32, 32>}, {pipeline_mode = #tpu.pipeline_mode<synchronous>, transform_indices = @transform_5, window_bounds = array<i64: 1, 32>}, {transform_indices = @transform_6, window_bounds = array<i64: 16, 32>}]} {
    %c0 = arith.constant 0 : index
    %c0_0 = arith.constant 0 : index
    %0 = vector.load %arg1[%c0, %c0_0] : memref<16x16xf32, #tpu.memory_space<vmem>>, vector<16x16xf32>
    %c0_1 = arith.constant 0 : index
    %c0_2 = arith.constant 0 : index
    %1 = vector.load %arg2[%c0_1, %c0_2] : memref<16x16xf32, #tpu.memory_space<vmem>>, vector<16x16xf32>
    %2 = tpu.concatenate %0, %1 in 1 : vector<16x16xf32>, vector<16x16xf32> -> vector<16x32xf32>
    %c0_3 = arith.constant 0 : index
    %c0_4 = arith.constant 0 : index
    %3 = vector.load %arg3[%c0_3, %c0_4] : memref<32x32xf32, #tpu.memory_space<vmem>>, vector<32x32xf32>
    %cst = arith.constant dense<0.000000e+00> : vector<16x32xf32>
    %4 = tpu.matmul %2, %3, %cst {dimension_numbers = #tpu.dot_dimension_numbers<[1], [0], [0], [1], [0, 0, 1, 1], [], []>} : vector<16x32xf32>, vector<32x32xf32>, vector<16x32xf32> -> vector<16x32xf32>
    %c0_5 = arith.constant 0 : index
    %c0_6 = arith.constant 0 : index
    %5 = vector.load %arg4[%c0_5, %c0_6] : memref<1x32xf32, #tpu.memory_space<vmem>>, vector<1x32xf32>
    %6 = vector.broadcast %5 : vector<1x32xf32> to vector<16x32xf32>
    %7 = arith.addf %4, %6 : vector<16x32xf32>
    %cst_7 = arith.constant 0.000000e+00 : f32
    %8 = vector.broadcast %cst_7 : f32 to vector<16x32xf32>
    %9 = arith.maximumf %7, %8 : vector<16x32xf32>
    %c0_8 = arith.constant 0 : index
    %c0_9 = arith.constant 0 : index
    %10 = vector.load %arg5[%c0_8, %c0_9] : memref<32x32xf32, #tpu.memory_space<vmem>>, vector<32x32xf32>
    %cst_10 = arith.constant dense<0.000000e+00> : vector<16x32xf32>
    %11 = tpu.matmul %9, %10, %cst_10 {dimension_numbers = #tpu.dot_dimension_numbers<[1], [0], [0], [1], [0, 0, 1, 1], [], []>} : vector<16x32xf32>, vector<32x32xf32>, vector<16x32xf32> -> vector<16x32xf32>
    %c0_11 = arith.constant 0 : index
    %c0_12 = arith.constant 0 : index
    %12 = vector.load %arg6[%c0_11, %c0_12] : memref<1x32xf32, #tpu.memory_space<vmem>>, vector<1x32xf32>
    %13 = vector.broadcast %12 : vector<1x32xf32> to vector<16x32xf32>
    %14 = arith.addf %11, %13 : vector<16x32xf32>
    %c0_13 = arith.constant 0 : index
    %c0_14 = arith.constant 0 : index
    %15 = vector.load %arg7[%c0_13, %c0_14] : memref<16x32xf32, #tpu.memory_space<vmem>>, vector<16x32xf32>
    tpu.vector_store %arg7[%c0_13, %c0_14], %14 {strides = array<i32>} : memref<16x32xf32, #tpu.memory_space<vmem>>, vector<16x32xf32>,
    return
  }
  func.func @transform_0(%arg0: i32) -> (i32, i32) {
    %c0_i32 = arith.constant 0 : i32
    %c0_i32_0 = arith.constant 0 : i32
    return %arg0, %c0_i32 : i32, i32
  }
  func.func @transform_1(%arg0: i32) -> (i32, i32) {
    %c0_i32 = arith.constant 0 : i32
    %c0_i32_0 = arith.constant 0 : i32
    return %arg0, %c0_i32 : i32, i32
  }
  func.func @transform_2(%arg0: i32) -> (i32, i32) {
    %c0_i32 = arith.constant 0 : i32
    %c0_i32_0 = arith.constant 0 : i32
    %c0_i32_1 = arith.constant 0 : i32
    return %c0_i32, %c0_i32_0 : i32, i32
  }
  func.func @transform_3(%arg0: i32) -> (i32, i32) {
    %c0_i32 = arith.constant 0 : i32
    %c0_i32_0 = arith.constant 0 : i32
    %c0_i32_1 = arith.constant 0 : i32
    return %c0_i32, %c0_i32_0 : i32, i32
  }
  func.func @transform_4(%arg0: i32) -> (i32, i32) {
    %c0_i32 = arith.constant 0 : i32
    %c0_i32_0 = arith.constant 0 : i32
    %c0_i32_1 = arith.constant 0 : i32
    return %c0_i32, %c0_i32_0 : i32, i32
  }
  func.func @transform_5(%arg0: i32) -> (i32, i32) {
    %c0_i32 = arith.constant 0 : i32
    %c0_i32_0 = arith.constant 0 : i32
    %c0_i32_1 = arith.constant 0 : i32
    return %c0_i32, %c0_i32_0 : i32, i32
  }
  func.func @transform_6(%arg0: i32) -> (i32, i32) {
    %c0_i32 = arith.constant 0 : i32
    %c0_i32_0 = arith.constant 0 : i32
    return %arg0, %c0_i32 : i32, i32
  }
}

</mosaic_0001>

<llo_original>
// kernel: tpu_custom_call.1
$region0: #{tpu_custom_call.1}
  #allocation0 [shape = 'u32[]', space=smem, size = 0x4, offset = 0x4, fixed_abs, tag = 'smem constant byte address 0x4 - core index']
  #allocation1 [shape = 'u32[72,128]{1,0:T(1,128)}', space=vmem, size = 0x9000, scoped, tag = 'internal scratch']
  %s0 = inlined_call_operand.hbm [shape: f32[16,16], index: 0, kind: input, shape index: {}]
  %s1 = inlined_call_operand.hbm [shape: f32[16,16], index: 1, kind: input, shape index: {}]
  %s2 = inlined_call_operand.hbm [shape: f32[32,32], index: 2, kind: input, shape index: {}]
  %s3 = inlined_call_operand.vmem [shape: f32[1,32], index: 3, kind: input, shape index: {}]
  %s4 = inlined_call_operand.hbm [shape: f32[32,32], index: 4, kind: input, shape index: {}]
  %s5 = inlined_call_operand.vmem [shape: f32[1,32], index: 5, kind: input, shape index: {}]
  %s6 = inlined_call_operand.hbm [shape: f32[16,32], index: 6, kind: output, shape index: {}]
  %s7 = sld [smem:[#allocation0]]
  $region50: #{tpu_custom_call.1} parent=0
    _
  %s9 = ssub.s32 1, %s7
  %s10 = scalar_select 0, %s9, %s7
  $region1: #{tpu_custom_call.1} parent=0
    #allocation2 [shape = 'u8[8192]{0}', space=vmem, size = 0x2000, scoped, tag = 'input window, operand 0, single buffered']
    #allocation3 [shape = 's32[1]{0}', space=sflag, size = 0x4, scoped, tag = 'scoped memory for tpu_custom_call.1']
    #allocation4 [shape = 's32[1]{0}', space=sflag, size = 0x4, scoped, tag = 'scoped memory for tpu_custom_call.1']
    #allocation5 [shape = 'u8[8192]{0}', space=vmem, size = 0x2000, scoped, tag = 'input window, operand 1, single buffered']
    #allocation6 [shape = 's32[1]{0}', space=sflag, size = 0x4, scoped, tag = 'scoped memory for tpu_custom_call.1']
    #allocation7 [shape = 'u8[16384]{0}', space=vmem, size = 0x4000, scoped, tag = 'input window, operand 2, single buffered']
    #allocation8 [shape = 'u8[16384]{0}', space=vmem, size = 0x4000, scoped, tag = 'input window, operand 4, single buffered']
    #allocation9 [shape = 's32[1]{0}', space=sflag, size = 0x4, scoped, tag = 'scoped memory for tpu_custom_call.1']
    #allocation10 [shape = 'u8[8192]{0}', space=vmem, size = 0x2000, scoped, tag = 'output window, operand 0, single buffered']
    %11 = vsyncpa [#allocation3], 0
    %12 = vsyncpa [#allocation6], 0
    %13 = vsyncpa [#allocation9], 0
    %14 = vsyncpa [#allocation4], 0
    // Predicated region
    $region2: #{tpu_custom_call.1} parent=1 // pred_check
      _
    $region3: #{tpu_custom_call.1} parent=1 // pred_check_branch
      %16 = sbr.rel (0) target = $region5
    $region4: #{tpu_custom_call.1} parent=1 // pred_region
      %18 = vsyncadd [#allocation3], 0
      %s19 = sshll.u32 %s0, 4
      %s20 = int_to_ptr.hbm [resolvable:$true] %s19
      %s21 = sshll.u32 [#allocation2], 4
      %s22 = int_to_ptr.vmem [resolvable:$true] %s21
      %27 = dma.hbm_to_vmem [thread:$0]  %s20, 256, %s22, [#allocation3], 128, 128, 8
    $region5: #{tpu_custom_call.1} parent=1 // pred_fallthru
      _
    // Predicated region
    $region6: #{tpu_custom_call.1} parent=1 // pred_check
      _
    $region7: #{tpu_custom_call.1} parent=1 // pred_check_branch
      %29 = sbr.rel (0) target = $region9
    $region8: #{tpu_custom_call.1} parent=1 // pred_region
      %31 = vsyncadd [#allocation6], 0
      %s32 = sshll.u32 %s1, 4
      %s33 = int_to_ptr.hbm [resolvable:$true] %s32
      %s34 = sshll.u32 [#allocation5], 4
      %s35 = int_to_ptr.vmem [resolvable:$true] %s34
      %40 = dma.hbm_to_vmem [thread:$0]  %s33, 256, %s35, [#allocation6], 128, 128, 8
    $region9: #{tpu_custom_call.1} parent=1 // pred_fallthru
      _
    // Predicated region
    $region10: #{tpu_custom_call.1} parent=1 // pred_check
      _
    $region11: #{tpu_custom_call.1} parent=1 // pred_check_branch
      %42 = sbr.rel (0) target = $region13
    $region12: #{tpu_custom_call.1} parent=1 // pred_region
      %44 = vsyncadd [#allocation6], 0
      %s45 = sshll.u32 %s2, 4
      %s46 = int_to_ptr.hbm [resolvable:$true] %s45
      %s47 = sshll.u32 [#allocation7], 4
      %s48 = int_to_ptr.vmem [resolvable:$true] %s47
      %53 = dma.hbm_to_vmem [thread:$0]  %s46, 512, %s48, [#allocation6], 128, 128, 8
    $region13: #{tpu_custom_call.1} parent=1 // pred_fallthru
      _
    // Predicated region
    $region14: #{tpu_custom_call.1} parent=1 // pred_check
      _
    $region15: #{tpu_custom_call.1} parent=1 // pred_check_branch
      %55 = sbr.rel (0) target = $region17
    $region16: #{tpu_custom_call.1} parent=1 // pred_region
      _
    $region17: #{tpu_custom_call.1} parent=1 // pred_fallthru
      _
    // Predicated region
    $region18: #{tpu_custom_call.1} parent=1 // pred_check
      _
    $region19: #{tpu_custom_call.1} parent=1 // pred_check_branch
      %57 = sbr.rel (0) target = $region21
    $region20: #{tpu_custom_call.1} parent=1 // pred_region
      %59 = vsyncadd [#allocation9], 0
      %s60 = sshll.u32 %s4, 4
      %s61 = int_to_ptr.hbm [resolvable:$true] %s60
      %s62 = sshll.u32 [#allocation8], 4
      %s63 = int_to_ptr.vmem [resolvable:$true] %s62
      %68 = dma.hbm_to_vmem [thread:$0]  %s61, 512, %s63, [#allocation9], 128, 128, 8
    $region21: #{tpu_custom_call.1} parent=1 // pred_fallthru
      _
    // Predicated region
    $region22: #{tpu_custom_call.1} parent=1 // pred_check
      _
    $region23: #{tpu_custom_call.1} parent=1 // pred_check_branch
      %70 = sbr.rel (0) target = $region25
    $region24: #{tpu_custom_call.1} parent=1 // pred_region
      _
    $region25: #{tpu_custom_call.1} parent=1 // pred_fallthru
      _
    // Predicated region
    $region26: #{tpu_custom_call.1} parent=1 // pred_check
      _
    $region27: #{tpu_custom_call.1} parent=1 // pred_check_branch
      %72 = sbr.rel (0) target = $region29
    $region28: #{tpu_custom_call.1} parent=1 // pred_region
      %74 = dma.done [#allocation3], 256
    $region29: #{tpu_custom_call.1} parent=1 // pred_fallthru
      _
    // Predicated region
    $region30: #{tpu_custom_call.1} parent=1 // pred_check
      _
    $region31: #{tpu_custom_call.1} parent=1 // pred_check_branch
      %76 = sbr.rel (0) target = $region33
    $region32: #{tpu_custom_call.1} parent=1 // pred_region
      %78 = dma.done [#allocation6], 256
    $region33: #{tpu_custom_call.1} parent=1 // pred_fallthru
      _
    // Predicated region
    $region34: #{tpu_custom_call.1} parent=1 // pred_check
      _
    $region35: #{tpu_custom_call.1} parent=1 // pred_check_branch
      %80 = sbr.rel (0) target = $region37
    $region36: #{tpu_custom_call.1} parent=1 // pred_region
      %82 = dma.done [#allocation6], 512
    $region37: #{tpu_custom_call.1} parent=1 // pred_fallthru
      _
    // Predicated region
    $region38: #{tpu_custom_call.1} parent=1 // pred_check
      _
    $region39: #{tpu_custom_call.1} parent=1 // pred_check_branch
      %84 = sbr.rel (0) target = $region41
    $region40: #{tpu_custom_call.1} parent=1 // pred_region
      %86 = dma.done [#allocation9], 512
    $region41: #{tpu_custom_call.1} parent=1 // pred_fallthru
      _
    %v87 = vld [vmem:[#allocation2] sm:$0xff]
    %v88 = vld [vmem:[#allocation2 + $0x8] sm:$0xff]
    %v89 = vld [vmem:[#allocation5] sm:$0xff]
    %v90 = vld [vmem:[#allocation5 + $0x8] sm:$0xff]
    %93 = vrot.lane.b32.xlu0 %v89, 16
    %v94 = vpop.permute.xlu0 %93
    %95 = vrot.lane.b32.xlu0 %v90, 16
    %v96 = vpop.permute.xlu0 %95
    %vm99 = vcmask 130048
    %v100 = vsel %vm99, %v87, %v94
    %v101 = vsel %vm99, %v88, %v96
    %v102 = vld [vmem:[#allocation7] sm:$0xff]
    %v103 = vld [vmem:[#allocation7 + $0x8] sm:$0xff]
    %v104 = vld [vmem:[#allocation7 + $0x10] sm:$0xff]
    %v105 = vld [vmem:[#allocation7 + $0x18] sm:$0xff]
    %v106 = vld [vmem:[%s3] sm:$0x1]
    %v108 = vperm.slane %v106, 0
    %vm110 = vcmask 261120
    %v112 = vsel %vm110, %v100, 0
    %v115 = vsel %vm110, %v101, 0
    %117 = vmatpush.msra.mxu0 0.0
    %118 = vmatpush.msra.mxu0 0.0
    %119 = vmatpush.msra.mxu0 0.0
    %120 = vmatpush.msra.mxu0 0.0
    %121 = vmatpush.msra.mxu0 0.0
    %122 = vmatpush.msra.mxu0 0.0
    %123 = vmatpush.msra.mxu0 0.0
    %124 = vmatpush.msra.mxu0 0.0
    %125 = vmatpush.msra.mxu0 0.0
    %126 = vmatpush.msra.mxu0 0.0
    %127 = vmatpush.msra.mxu0 0.0
    %128 = vmatpush.msra.mxu0 0.0
    %129 = vmatpush.msra.mxu0 %v105
    %130 = vmatpush.msra.mxu0 %v104
    %131 = vmatpush.msra.mxu0 %v103
    %132 = vmatpush.msra.mxu0 %v102
    %133 = vmatmul.f32.gmra.mxu0 %v112
    %v134 = vpop.f32.mrf.mxu0
    %v135 = vadd.f32 %v108, %v134
    %136 = vmatmul.f32.gmra.mxu0 %v115
    %v137 = vpop.f32.mrf.mxu0
    %v138 = vadd.f32 %v108, %v137
    %139 = vdwg.mxu0
    %v140 = vmax.f32 %v135, 0.0
    %v141 = vmax.f32 %v138, 0.0
    %v142 = vld [vmem:[#allocation8] sm:$0xff]
    %v143 = vld [vmem:[#allocation8 + $0x8] sm:$0xff]
    %v144 = vld [vmem:[#allocation8 + $0x10] sm:$0xff]
    %v145 = vld [vmem:[#allocation8 + $0x18] sm:$0xff]
    %v146 = vld [vmem:[%s5] sm:$0x1]
    %v148 = vperm.slane %v146, 0
    %v151 = vsel %vm110, %v140, 0
    %v154 = vsel %vm110, %v141, 0
    %156 = vmatpush.msra.mxu0 0.0
    %157 = vmatpush.msra.mxu0 0.0
    %158 = vmatpush.msra.mxu0 0.0
    %159 = vmatpush.msra.mxu0 0.0
    %160 = vmatpush.msra.mxu0 0.0
    %161 = vmatpush.msra.mxu0 0.0
    %162 = vmatpush.msra.mxu0 0.0
    %163 = vmatpush.msra.mxu0 0.0
    %164 = vmatpush.msra.mxu0 0.0
    %165 = vmatpush.msra.mxu0 0.0
    %166 = vmatpush.msra.mxu0 0.0
    %167 = vmatpush.msra.mxu0 0.0
    %168 = vmatpush.msra.mxu0 %v145
    %169 = vmatpush.msra.mxu0 %v144
    %170 = vmatpush.msra.mxu0 %v143
    %171 = vmatpush.msra.mxu0 %v142
    %172 = vmatmul.f32.gmra.mxu0 %v151
    %v173 = vpop.f32.mrf.mxu0
    %v174 = vadd.f32 %v148, %v173
    %175 = vmatmul.f32.gmra.mxu0 %v154
    %v176 = vpop.f32.mrf.mxu0
    %v177 = vadd.f32 %v148, %v176
    %178 = vdwg.mxu0
    %179 = vst.msk [vmem:[#allocation10] sm:$0xff] %vm110, %v174
    %180 = vst.msk [vmem:[#allocation10 + $0x8] sm:$0xff] %vm110, %v177
    // Predicated region
    $region42: #{tpu_custom_call.1} parent=1 // pred_check
      _
    $region43: #{tpu_custom_call.1} parent=1 // pred_check_branch
      %182 = sbr.rel (0) target = $region45
    $region44: #{tpu_custom_call.1} parent=1 // pred_region
      %184 = vsyncadd [#allocation4], 0
      %s185 = sshll.u32 [#allocation10], 4
      %s186 = int_to_ptr.vmem [resolvable:$true] %s185
      %s187 = sshll.u32 %s6, 4
      %s188 = int_to_ptr.hbm [resolvable:$true] %s187
      %193 = dma.vmem_to_hbm [thread:$0]  %s186, 256, %s188, [#allocation4], 128, 128, 8
    $region45: #{tpu_custom_call.1} parent=1 // pred_fallthru
      _
    // Predicated region
    $region46: #{tpu_custom_call.1} parent=1 // pred_check
      _
    $region47: #{tpu_custom_call.1} parent=1 // pred_check_branch
      %195 = sbr.rel (0) target = $region49
    $region48: #{tpu_custom_call.1} parent=1 // pred_region
      %197 = dma.done [#allocation4], 256
    $region49: #{tpu_custom_call.1} parent=1 // pred_fallthru
      _
    %198 = vsyncpa [#allocation3], 1
    %199 = vsyncpa [#allocation6], 1
    %200 = vsyncpa [#allocation9], 1
    %201 = vsyncpa [#allocation4], 1

</llo_original>
